<compile_context>
chip_gen: v7x
topology: tpu7x:2x2x1
jax: 0.10.0
libtpu: 0.0.40
codegen_flags: <defaults>
</compile_context>

<pallas_src>
import functools

import jax
import jax.numpy as jnp
from jax.experimental import pallas as pl
from jax.experimental.pallas import tpu as pltpu

_EPS = 1e-7
_LANES = 128
_MAX_TILE_ROWS = 512  # ~85% of HBM roofline per measured Pallas tiling data


def _lq_elementwise(z, q):
    """(1 - z**q) / q with the power specialized to avoid exp+log when q==0.5."""
    if q == 0.5:
        return (1.0 - jnp.sqrt(z)) * 2.0
    return (1.0 - jnp.exp(q * jnp.log(z))) / q


def _lq_loss_kernel(x_ref, t_ref, o_ref, *, q, tile_rows, total_rows):
    """One grid step: elementwise LqLoss on a (tile_rows, 128) tile, emitting a
    vreg-shaped (1, 8, 128) partial sum for this tile."""
    step = pl.program_id(0)

    x = x_ref[...].astype(jnp.float32)
    t = t_ref[...].astype(jnp.float32)

    p = jax.nn.sigmoid(x)                 # sigmoid(output)
    lq = _lq_elementwise(p * t + _EPS, q)

    # Static check: masking is only needed if the last tile runs past the real
    # rows; all other shapes compile with zero masking work.
    if total_rows % tile_rows != 0:
        row = step * tile_rows + jax.lax.broadcasted_iota(
            jnp.int32, (tile_rows, _LANES), 0)
        lq = jnp.where(row < total_rows, lq, 0.0)

    # (tile_rows,128) -> (tile_rows//8, 8, 128) is layout-preserving; summing
    # axis 0 is pure VPU vreg adds (no cross-lane / XLU work per step).
    o_ref[...] = lq.reshape(tile_rows // 8, 8, _LANES).sum(
        axis=0, keepdims=True)


def lq_loss_pallas(output, target, q=0.5):
    """LqLoss(q) forward: mean over all elements."""
    assert output.shape == target.shape
    n_total = output.size
    if n_total == 0:
        return jnp.float32(0.0)

    x = output.reshape(-1)
    t = target.reshape(-1)

    main = (n_total // _LANES) * _LANES   # elements handled by the kernel
    rows = main // _LANES
    tail = n_total - main                 # < 128 leftover elements (usually 0)

    loss_sum = jnp.float32(0.0)

    if rows > 0:
        if tail:
            xm = jax.lax.slice(x, (0,), (main,))
            tm = jax.lax.slice(t, (0,), (main,))
        else:
            xm, tm = x, t                 # free reshape only, no copy
        xm = xm.reshape(rows, _LANES)
        tm = tm.reshape(rows, _LANES)

        if rows >= _MAX_TILE_ROWS:
            tile_rows = _MAX_TILE_ROWS
        else:
            tile_rows = ((rows + 7) // 8) * 8   # multiple of 8, single tile
        n_tiles = pl.cdiv(rows, tile_rows)

        in_spec = pl.BlockSpec((tile_rows, _LANES), lambda i: (i, 0))
        partials = pl.pallas_call(
            functools.partial(
                _lq_loss_kernel, q=q, tile_rows=tile_rows, total_rows=rows),
            out_shape=jax.ShapeDtypeStruct((n_tiles, 8, _LANES), jnp.float32),
            grid=(n_tiles,),
            in_specs=[in_spec, in_spec],
            out_specs=pl.BlockSpec((1, 8, _LANES), lambda i: (i, 0, 0)),
            compiler_params=pltpu.CompilerParams(
                dimension_semantics=("parallel",)),   # megacore split on v7x
        )(xm, tm)
        loss_sum = jnp.sum(partials, dtype=jnp.float32)

    if tail:
        # Tiny (<128 element) remainder handled in plain JAX; avoids a
        # full-array pad copy just to make the length divisible by 128.
        xt = jax.lax.slice(x, (main,), (n_total,)).astype(jnp.float32)
        tt = jax.lax.slice(t, (main,), (n_total,)).astype(jnp.float32)
        loss_sum = loss_sum + jnp.sum(
            _lq_elementwise(jax.nn.sigmoid(xt) * tt + _EPS, q))

    return (loss_sum / jnp.float32(n_total)).astype(jnp.float32)


def _lq_loss_ref(output, target, q=0.5):
    p = jax.nn.sigmoid(output.astype(jnp.float32))
    loss = p * target.astype(jnp.float32)
    loss = (1.0 - jnp.power(loss + _EPS, q)) / q
    return jnp.mean(loss)


if __name__ == "__main__":
    key = jax.random.PRNGKey(0)
    k1, k2 = jax.random.split(key)

    # Small NCHW shapes consistent with a segmentation-style loss.
    B, C, H, W = 2, 4, 16, 16
    output = jax.random.normal(k1, (B, C, H, W), dtype=jnp.float32)
    target = (jax.random.uniform(k2, (B, C, H, W)) > 0.5).astype(jnp.float32)

    q = 0.5
    result = jax.block_until_ready(lq_loss_pallas(output, target, q=q))
    ref = jax.block_until_ready(_lq_loss_ref(output, target, q=q))

    assert jnp.allclose(result, ref, rtol=1e-5, atol=1e-5), (result, ref)
    print("KERNEL_OK")
</pallas_src>

<mosaic_0001>
module attributes {stable_mosaic.version = 11 : i64} {
  func.func @_lq_loss_kernel(%arg0: i32, %arg1: memref<16x128xf32, #tpu.memory_space<vmem>>, %arg2: memref<16x128xf32, #tpu.memory_space<vmem>>, %arg3: memref<1x8x128xf32, #tpu.memory_space<vmem>>) attributes {dimension_semantics = [#tpu.dimension_semantics<parallel>], iteration_bounds = array<i64: 1>, scalar_prefetch = 0 : i64, scratch_operands = 0 : i64, tpu.core_type = #tpu.core_type<tc>, window_params = [{transform_indices = @transform_0, window_bounds = array<i64: 16, 128>}, {transform_indices = @transform_1, window_bounds = array<i64: 16, 128>}, {transform_indices = @transform_2, window_bounds = array<i64: 1, 8, 128>}]} {
    %c0 = arith.constant 0 : index
    %c0_0 = arith.constant 0 : index
    %0 = vector.load %arg1[%c0, %c0_0] : memref<16x128xf32, #tpu.memory_space<vmem>>, vector<16x128xf32>
    %c0_1 = arith.constant 0 : index
    %c0_2 = arith.constant 0 : index
    %1 = vector.load %arg2[%c0_1, %c0_2] : memref<16x128xf32, #tpu.memory_space<vmem>>, vector<16x128xf32>
    %2 = arith.negf %0 : vector<16x128xf32>
    %3 = math.exp %2 : vector<16x128xf32>
    %cst = arith.constant 1.000000e+00 : f32
    %4 = vector.broadcast %cst : f32 to vector<16x128xf32>
    %5 = arith.addf %4, %3 : vector<16x128xf32>
    %6 = arith.divf %4, %5 : vector<16x128xf32>
    %7 = arith.mulf %6, %1 : vector<16x128xf32>
    %cst_3 = arith.constant 1.000000e-07 : f32
    %8 = vector.broadcast %cst_3 : f32 to vector<16x128xf32>
    %9 = arith.addf %7, %8 : vector<16x128xf32>
    %10 = math.sqrt %9 : vector<16x128xf32>
    %cst_4 = arith.constant 1.000000e+00 : f32
    %11 = vector.broadcast %cst_4 : f32 to vector<16x128xf32>
    %12 = arith.subf %11, %10 : vector<16x128xf32>
    %cst_5 = arith.constant 2.000000e+00 : f32
    %13 = vector.broadcast %cst_5 : f32 to vector<16x128xf32>
    %14 = arith.mulf %12, %13 : vector<16x128xf32>
    %15 = vector.shape_cast %14 : vector<16x128xf32> to vector<2x8x128xf32>
    %cst_6 = arith.constant dense<0.000000e+00> : vector<8x128xf32>
    %16 = vector.multi_reduction <add>, %15, %cst_6 [0] : vector<2x8x128xf32> to vector<8x128xf32>
    %17 = vector.shape_cast %16 : vector<8x128xf32> to vector<1x8x128xf32>
    %c0_7 = arith.constant 0 : index
    %c0_8 = arith.constant 0 : index
    %c0_9 = arith.constant 0 : index
    %18 = vector.load %arg3[%c0_7, %c0_8, %c0_9] : memref<1x8x128xf32, #tpu.memory_space<vmem>>, vector<1x8x128xf32>
    tpu.vector_store %arg3[%c0_7, %c0_8, %c0_9], %17 {strides = array<i32>} : memref<1x8x128xf32, #tpu.memory_space<vmem>>, vector<1x8x128xf32>,
    return
  }
  func.func @transform_0(%arg0: i32) -> (i32, i32) {
    %c0_i32 = arith.constant 0 : i32
    %c0_i32_0 = arith.constant 0 : i32
    return %arg0, %c0_i32 : i32, i32
  }
  func.func @transform_1(%arg0: i32) -> (i32, i32) {
    %c0_i32 = arith.constant 0 : i32
    %c0_i32_0 = arith.constant 0 : i32
    return %arg0, %c0_i32 : i32, i32
  }
  func.func @transform_2(%arg0: i32) -> (i32, i32, i32) {
    %c0_i32 = arith.constant 0 : i32
    %c0_i32_0 = arith.constant 0 : i32
    %c0_i32_1 = arith.constant 0 : i32
    return %arg0, %c0_i32, %c0_i32_0 : i32, i32, i32
  }
}

</mosaic_0001>

<llo_original>
// kernel: tpu_custom_call.1
$region0: #{tpu_custom_call.1}
  #allocation0 [shape = 'u32[]', space=smem, size = 0x4, offset = 0x4, fixed_abs, tag = 'smem constant byte address 0x4 - core index']
  #allocation1 [shape = 'u32[144,128]{1,0:T(1,128)}', space=vmem, size = 0x12000, scoped, tag = 'internal scratch']
  %s0 = inlined_call_operand.hbm [shape: f32[16,128], index: 0, kind: input, shape index: {}]
  %s1 = inlined_call_operand.hbm [shape: f32[16,128], index: 1, kind: input, shape index: {}]
  %s2 = inlined_call_operand.hbm [shape: f32[1,8,128], index: 2, kind: output, shape index: {}]
  %s3 = sld [smem:[#allocation0]]
  $region26: #{tpu_custom_call.1} parent=0
    _
  %s5 = ssub.s32 1, %s3
  %s6 = scalar_select 0, %s5, %s3
  $region1: #{tpu_custom_call.1} parent=0
    #allocation2 [shape = 'u8[8192]{0}', space=vmem, size = 0x2000, scoped, tag = 'input window, operand 0, single buffered']
    #allocation3 [shape = 's32[1]{0}', space=sflag, size = 0x4, scoped, tag = 'scoped memory for tpu_custom_call.1']
    #allocation4 [shape = 's32[1]{0}', space=sflag, size = 0x4, scoped, tag = 'scoped memory for tpu_custom_call.1']
    #allocation5 [shape = 'u8[8192]{0}', space=vmem, size = 0x2000, scoped, tag = 'input window, operand 1, single buffered']
    #allocation6 [shape = 's32[1]{0}', space=sflag, size = 0x4, scoped, tag = 'scoped memory for tpu_custom_call.1']
    #allocation7 [shape = 'u8[4096]{0}', space=vmem, size = 0x1000, scoped, tag = 'output window, operand 0, single buffered']
    %7 = vsyncpa [#allocation3], 0
    %8 = vsyncpa [#allocation6], 0
    %9 = vsyncpa [#allocation4], 0
    // Predicated region
    $region2: #{tpu_custom_call.1} parent=1 // pred_check
      _
    $region3: #{tpu_custom_call.1} parent=1 // pred_check_branch
      %11 = sbr.rel (0) target = $region5
    $region4: #{tpu_custom_call.1} parent=1 // pred_region
      %s13 = ssub.s32 256, 256
      %14 = vsyncadd [#allocation3], %s13
      %s15 = sshll.u32 [#allocation2], 4
      %s16 = int_to_ptr.vmem [resolvable:$true] %s15
      %21 = dma.hbm_to_vmem [thread:$0]  %s0, 256, %s16, [#allocation3], 128, 128, 8
    $region5: #{tpu_custom_call.1} parent=1 // pred_fallthru
      _
    // Predicated region
    $region6: #{tpu_custom_call.1} parent=1 // pred_check
      _
    $region7: #{tpu_custom_call.1} parent=1 // pred_check_branch
      %23 = sbr.rel (0) target = $region9
    $region8: #{tpu_custom_call.1} parent=1 // pred_region
      %s25 = ssub.s32 256, 256
      %26 = vsyncadd [#allocation6], %s25
      %s27 = sshll.u32 [#allocation5], 4
      %s28 = int_to_ptr.vmem [resolvable:$true] %s27
      %33 = dma.hbm_to_vmem [thread:$0]  %s1, 256, %s28, [#allocation6], 128, 128, 8
    $region9: #{tpu_custom_call.1} parent=1 // pred_fallthru
      _
    // Predicated region
    $region10: #{tpu_custom_call.1} parent=1 // pred_check
      _
    $region11: #{tpu_custom_call.1} parent=1 // pred_check_branch
      %35 = sbr.rel (0) target = $region13
    $region12: #{tpu_custom_call.1} parent=1 // pred_region
      %36 = dma.done [#allocation3], 256
    $region13: #{tpu_custom_call.1} parent=1 // pred_fallthru
      _
    // Predicated region
    $region14: #{tpu_custom_call.1} parent=1 // pred_check
      _
    $region15: #{tpu_custom_call.1} parent=1 // pred_check_branch
      %38 = sbr.rel (0) target = $region17
    $region16: #{tpu_custom_call.1} parent=1 // pred_region
      %39 = dma.done [#allocation6], 256
    $region17: #{tpu_custom_call.1} parent=1 // pred_fallthru
      _
    %v40 = vld [vmem:[#allocation2] sm:$0xff]
    %v41 = vld [vmem:[#allocation2 + $0x8] sm:$0xff]
    %v42 = vld [vmem:[#allocation5] sm:$0xff]
    %v43 = vld [vmem:[#allocation5 + $0x8] sm:$0xff]
    %v44 = vxor.u32 %v40, 2147483648
    %v45 = vxor.u32 %v41, 2147483648
    %v46 = vmul.f32 %v44, 1.442695
    %v47 = vpow.pop %v46
    %v48 = vmul.f32 %v45, 1.442695
    %v49 = vpow.pop %v48
    %v50 = vadd.f32 %v47, 1.0
    %v51 = vadd.f32 %v49, 1.0
    %v52 = vrcp.pop %v50
    %v53 = vmul.f32 1.0, %v52
    %v54 = vrcp.pop %v51
    %v55 = vmul.f32 1.0, %v54
    %v56 = vmul.f32 %v53, %v42
    %v57 = vmul.f32 %v55, %v43
    %v58 = vadd.f32 %v56, 1e-07
    %v59 = vadd.f32 %v57, 1e-07
    %v60 = vrsqrt.pop %v58
    %v61 = vmul.f32 %v58, %v60
    %vm62 = vcmp.eq.f32.partialorder %v58, inf
    %v63 = vsel %vm62, %v58, %v61
    %vm64 = vcmp.eq.f32.partialorder %v58, 0.0
    %v65 = vand.u32 %v58, 2147483648
    %v66 = vsel %vm64, %v65, %v63
    %v67 = vrsqrt.pop %v59
    %v68 = vmul.f32 %v59, %v67
    %vm69 = vcmp.eq.f32.partialorder %v59, inf
    %v70 = vsel %vm69, %v59, %v68
    %vm71 = vcmp.eq.f32.partialorder %v59, 0.0
    %v72 = vand.u32 %v59, 2147483648
    %v73 = vsel %vm71, %v72, %v70
    %v74 = vsub.f32 1.0, %v66
    %v75 = vsub.f32 1.0, %v73
    %v76 = vmul.f32 %v74, 2.0
    %v77 = vmul.f32 %v75, 2.0
    %v78 = vadd.f32 %v76, %v77
    %79 = vst [vmem:[#allocation7] sm:$0xff] %v78
    // Predicated region
    $region18: #{tpu_custom_call.1} parent=1 // pred_check
      _
    $region19: #{tpu_custom_call.1} parent=1 // pred_check_branch
      %81 = sbr.rel (0) target = $region21
    $region20: #{tpu_custom_call.1} parent=1 // pred_region
      %s83 = ssub.s32 128, 128
      %84 = vsyncadd [#allocation4], %s83
      %s86 = sshll.u32 [#allocation7], 4
      %s87 = int_to_ptr.vmem [resolvable:$true] %s86
      %89 = dma.vmem_to_hbm [thread:$0]  %s87, 128, %s2, [#allocation4]
    $region21: #{tpu_custom_call.1} parent=1 // pred_fallthru
      _
    // Predicated region
    $region22: #{tpu_custom_call.1} parent=1 // pred_check
      _
    $region23: #{tpu_custom_call.1} parent=1 // pred_check_branch
      %91 = sbr.rel (0) target = $region25
    $region24: #{tpu_custom_call.1} parent=1 // pred_region
      %92 = dma.done [#allocation4], 128
    $region25: #{tpu_custom_call.1} parent=1 // pred_fallthru
      _
    %93 = vsyncpa [#allocation3], 1
    %94 = vsyncpa [#allocation6], 1
    %95 = vsyncpa [#allocation4], 1

</llo_original>
